<compile_context>
chip_gen: v7x
topology: tpu7x:2x2x1
jax: 0.10.0
libtpu: 0.0.40
codegen_flags: <defaults>
</compile_context>

<pallas_src>
import jax
import jax.numpy as jnp
from jax import lax
from jax.experimental import pallas as pl
from jax.experimental.pallas import tpu as pltpu

ALPHA = 1.0          # HardNegativeNCE(alpha=1, beta=0.5) from the module __init__
BETA = 0.5
SI_TI_WEIGHT = 1.0   # BLIPCir defaults: si_ti_weight=1.0, si_tc_weight=0.0
TEMP = 0.07          # BLIP temperature
EPS = 1e-12          # F.normalize eps


def _l2norm(x):
    ss = jnp.sum(x * x, axis=-1, keepdims=True)
    return x * lax.rsqrt(jnp.maximum(ss, EPS * EPS))


def _pick_bblk(B, Nv, Nt, D):
    """Samples per grid step: smallest divisor of B giving >=256 matmul rows,
    capped so double-buffered f32 activation blocks stay well inside VMEM."""
    target = -(-256 // max(Nv, 1))                       # ceil(256 / Nv)
    bytes_per_sample = (Nv + Nt + 1) * D * 4             # f32 activations
    cap = max(1, (16 * 1024 * 1024) // (2 * bytes_per_sample))
    best = 1
    for d in range(1, B + 1):
        if B % d != 0 or d > cap:
            continue
        best = d
        if d >= target:
            break
    return best


# --------------------------------------------------------------------------
# Kernel 1: per-block projection + normalize + mean aggregation.
#   grid = (B // Bblk,); each step handles Bblk samples' image tokens, text
#   tokens and multimodal CLS rows.  Fully independent per step ("parallel").
# --------------------------------------------------------------------------
def _proj_kernel(img_ref, txt_ref, cls_ref, vis_w_ref, vis_b_ref,
                 txt_w_ref, txt_b_ref, qtf_ref):
    bf16, f32 = jnp.bfloat16, jnp.float32
    Bblk, Nv, D = img_ref.shape
    Nt = txt_ref.shape[1]
    E = vis_w_ref.shape[1]

    # Cast weights/activations to bf16 in-kernel (MXU input rate, f32 accum).
    vis_w = vis_w_ref[...].astype(bf16)
    txt_w = txt_w_ref[...].astype(bf16)
    vis_b = vis_b_ref[...]                                  # (1, E) f32
    txt_b = txt_b_ref[...]

    # vision_proj over all image tokens in the block: (Bblk*Nv, D) @ (D, E)
    img = img_ref[...].astype(bf16).reshape(Bblk * Nv, D)
    qn = _l2norm(jnp.dot(img, vis_w, preferred_element_type=f32) + vis_b)
    q = jnp.sum(qn.reshape(Bblk, Nv, E), axis=1, keepdims=True) * (1.0 / Nv)

    # text_proj over all text tokens in the block: (Bblk*Nt, D) @ (D, E)
    txt = txt_ref[...].astype(bf16).reshape(Bblk * Nt, D)
    tn = _l2norm(jnp.dot(txt, txt_w, preferred_element_type=f32) + txt_b)
    t = jnp.sum(tn.reshape(Bblk, Nt, E), axis=1, keepdims=True) * (1.0 / Nt)

    # text_proj on the multimodal CLS rows (same staged weight): (Bblk, D)@(D, E)
    cls = cls_ref[...].reshape(Bblk, D).astype(bf16)
    f = _l2norm(jnp.dot(cls, txt_w, preferred_element_type=f32) + txt_b)

    # One stacked (Bblk, 3, E) output block -> single lane-dense DMA per step.
    qtf_ref[:, 0:1, :] = q
    qtf_ref[:, 1:2, :] = t
    qtf_ref[:, 2:3, :] = f.reshape(Bblk, 1, E)


# --------------------------------------------------------------------------
# Kernel 2: weighted combination + HardNegativeNCE loss (tiny epilogue).
#   Note: B == 1 is degenerate for HardNegativeNCE ((B-1)=0 -> 0/0), exactly
#   as in the original PyTorch loss.
# --------------------------------------------------------------------------
def _loss_kernel(w_ref, temp_ref, qtf_ref, tar_ref, loss_ref):
    f32 = jnp.float32
    B = qtf_ref.shape[0]

    qtf = qtf_ref[...]                                           # (B, 3, E)
    comb = (w_ref[0] * qtf[:, 0, :] + w_ref[1] * qtf[:, 1, :]
            + w_ref[2] * qtf[:, 2, :])                           # (B, E)
    tar = _l2norm(tar_ref[...])                                  # (B, E)

    inv_temp = 1.0 / temp_ref[0]
    sim = lax.dot_general(comb, tar, (((1,), (1,)), ((), ())),
                          preferred_element_type=f32) * inv_temp  # (B, B)

    ri = lax.broadcasted_iota(jnp.int32, (B, B), 0)
    ci = lax.broadcasted_iota(jnp.int32, (B, B), 1)
    eye = ri == ci
    diag_mean = jnp.sum(jnp.where(eye, sim, 0.0)) * (1.0 / B)

    # image->text direction: per-row max shift; reciprocal goes to the EUP slot.
    m_r = jnp.max(sim, axis=1, keepdims=True)
    eb_r = jnp.exp(BETA * (sim - m_r))
    es_r = eb_r * eb_r if BETA == 0.5 else jnp.exp(sim - m_r)
    off_r = jnp.sum(jnp.where(eye, 0.0, eb_r), axis=1, keepdims=True)
    w_v2t = (B - 1.0) * eb_r * pl.reciprocal(off_r, approx=True)
    if ALPHA != 1.0:
        w_v2t = w_v2t ** ALPHA
    w_v2t = jnp.where(eye, 1.0, w_v2t)
    den_v2t = jnp.log(jnp.sum(es_r * w_v2t, axis=1, keepdims=True)) + m_r  # (B,1)

    # text->image direction: per-column max shift.
    m_c = jnp.max(sim, axis=0, keepdims=True)
    eb_c = jnp.exp(BETA * (sim - m_c))
    es_c = eb_c * eb_c if BETA == 0.5 else jnp.exp(sim - m_c)
    off_c = jnp.sum(jnp.where(eye, 0.0, eb_c), axis=0, keepdims=True)
    w_t2v = (B - 1.0) * eb_c * pl.reciprocal(off_c, approx=True)
    if ALPHA != 1.0:
        w_t2v = w_t2v ** ALPHA
    w_t2v = jnp.where(eye, 1.0, w_t2v)
    den_t2v = jnp.log(jnp.sum(es_c * w_t2v, axis=0, keepdims=True)) + m_c  # (1,B)

    loss = jnp.mean(den_v2t) + jnp.mean(den_t2v) - 2.0 * diag_mean
    loss_ref[...] = jnp.reshape(loss * SI_TI_WEIGHT, (1, 1))


def blip_imp_loss(W, ref_img_embs, txt_embs, si_cls,
                  vis_w, vis_b, txt_w, txt_b, tar_img_feat, temp=TEMP):
    """Fused Pallas implementation of BLIP_Imp.forward's hot path."""
    B, Nv, D = ref_img_embs.shape
    _, Nt, _ = txt_embs.shape
    E = vis_w.shape[1]
    f32 = jnp.float32

    Bblk = _pick_bblk(B, Nv, Nt, D)
    grid = (B // Bblk,)

    # Metadata-only reshapes; activations go in at encoder-native f32 (the
    # bf16 cast happens inside the kernel, avoiding an extra HBM pass).
    cls3 = si_cls.reshape(B, 1, D)
    vis_b2 = vis_b.reshape(1, E).astype(f32)
    txt_b2 = txt_b.reshape(1, E).astype(f32)

    qtf = pl.pallas_call(
        _proj_kernel,
        grid=grid,
        in_specs=[
            pl.BlockSpec((Bblk, Nv, D), lambda b: (b, 0, 0)),
            pl.BlockSpec((Bblk, Nt, D), lambda b: (b, 0, 0)),
            pl.BlockSpec((Bblk, 1, D), lambda b: (b, 0, 0)),
            pl.BlockSpec((D, E), lambda b: (0, 0)),
            pl.BlockSpec((1, E), lambda b: (0, 0)),
            pl.BlockSpec((D, E), lambda b: (0, 0)),
            pl.BlockSpec((1, E), lambda b: (0, 0)),
        ],
        out_specs=pl.BlockSpec((Bblk, 3, E), lambda b: (b, 0, 0)),
        out_shape=jax.ShapeDtypeStruct((B, 3, E), f32),
        compiler_params=pltpu.CompilerParams(
            dimension_semantics=("parallel",),
            vmem_limit_bytes=48 * 1024 * 1024),   # fits v7x 64 MiB, headroom elsewhere
    )(ref_img_embs, txt_embs, cls3, vis_w, vis_b2, txt_w, txt_b2)

    smem = pl.BlockSpec(memory_space=pltpu.MemorySpace.SMEM)
    vmem = pl.BlockSpec(memory_space=pltpu.MemorySpace.VMEM)
    loss = pl.pallas_call(
        _loss_kernel,
        out_shape=jax.ShapeDtypeStruct((1, 1), f32),
        in_specs=[smem, smem, vmem, vmem],
        out_specs=vmem,
    )(W.astype(f32), jnp.asarray([temp], f32), qtf, tar_img_feat.astype(f32))
    return loss[0, 0]


def blip_imp_loss_ref(W, ref_img_embs, txt_embs, si_cls,
                      vis_w, vis_b, txt_w, txt_b, tar_img_feat, temp=TEMP):
    """Pure-JAX reference of the same math (bf16 matmul inputs, f32 accum)."""
    bf16 = jnp.bfloat16
    f32 = jnp.float32
    B = ref_img_embs.shape[0]
    q = _l2norm(jnp.dot(ref_img_embs.astype(bf16), vis_w.astype(bf16),
                        preferred_element_type=f32) + vis_b).mean(axis=1)
    t = _l2norm(jnp.dot(txt_embs.astype(bf16), txt_w.astype(bf16),
                        preferred_element_type=f32) + txt_b).mean(axis=1)
    f = _l2norm(jnp.dot(si_cls.astype(bf16), txt_w.astype(bf16),
                        preferred_element_type=f32) + txt_b)
    comb = jnp.einsum('i,ibj->bj', W, jnp.stack([q, t, f], axis=0))
    tar = _l2norm(tar_img_feat)
    sim = comb @ tar.T / temp
    eye = jnp.eye(B, dtype=bool)
    diag = jnp.diagonal(sim)
    exp_b = jnp.exp(BETA * sim)
    deb = jnp.diagonal(exp_b)
    w_v2t = (B - 1) * exp_b / (exp_b.sum(1, keepdims=True) - deb[:, None])
    w_t2v = (B - 1) * exp_b / (exp_b.sum(0, keepdims=True) - deb[None, :])
    w_v2t = jnp.where(eye, 1.0, w_v2t)
    w_t2v = jnp.where(eye, 1.0, w_t2v)
    exp_s = jnp.exp(sim)
    den_v2t = jnp.log((exp_s * w_v2t).sum(1))
    den_t2v = jnp.log((exp_s * w_t2v).sum(0))
    return (jnp.mean(den_v2t - diag) + jnp.mean(den_t2v - diag)) * SI_TI_WEIGHT


if __name__ == "__main__":
    # Small but lane/sublane-dense shapes (D, E multiples of 128; Nv, Nt of 8).
    B, Nv, Nt, D, E = 4, 16, 16, 128, 256

    key = jax.random.PRNGKey(0)
    keys = jax.random.split(key, 8)

    # Synthetic encoder outputs (stand-ins for frozen BLIP encoders).
    ref_img_embs = jax.random.normal(keys[0], (B, Nv, D), jnp.float32)   # visual encoder out
    txt_embs = jax.random.normal(keys[1], (B, Nt, D), jnp.float32)       # text encoder out
    si_cls = jax.random.normal(keys[2], (B, D), jnp.float32)             # multimodal CLS out
    tar_img_feat = jax.random.normal(keys[3], (B, E), jnp.float32)       # batch['tar_img_feat']

    # Deterministic parameters.
    vis_w = 0.02 * jax.random.normal(keys[4], (D, E), jnp.float32)   # vision_proj weight^T
    vis_b = jnp.zeros((E,), jnp.float32)
    txt_w = 0.02 * jax.random.normal(keys[5], (D, E), jnp.float32)   # text_proj weight^T
    txt_b = jnp.zeros((E,), jnp.float32)
    W = jnp.asarray([0.0, 0.0, 1.0], jnp.float32)                    # self.W

    loss = blip_imp_loss(W, ref_img_embs, txt_embs, si_cls,
                         vis_w, vis_b, txt_w, txt_b, tar_img_feat)
    loss = jax.block_until_ready(loss)

    loss_ref = blip_imp_loss_ref(W, ref_img_embs, txt_embs, si_cls,
                                 vis_w, vis_b, txt_w, txt_b, tar_img_feat)
    assert jnp.allclose(loss, loss_ref, rtol=1e-2, atol=1e-2), (loss, loss_ref)

    print("KERNEL_OK")
</pallas_src>

<mosaic_0001>
module attributes {stable_mosaic.version = 11 : i64} {
  func.func @_proj_kernel(%arg0: i32, %arg1: memref<4x16x128xf32, #tpu.memory_space<vmem>>, %arg2: memref<4x16x128xf32, #tpu.memory_space<vmem>>, %arg3: memref<4x1x128xf32, #tpu.memory_space<vmem>>, %arg4: memref<128x256xf32, #tpu.memory_space<vmem>>, %arg5: memref<1x256xf32, #tpu.memory_space<vmem>>, %arg6: memref<128x256xf32, #tpu.memory_space<vmem>>, %arg7: memref<1x256xf32, #tpu.memory_space<vmem>>, %arg8: memref<4x3x256xf32, #tpu.memory_space<vmem>>) attributes {dimension_semantics = [#tpu.dimension_semantics<parallel>], iteration_bounds = array<i64: 1>, scalar_prefetch = 0 : i64, scratch_operands = 0 : i64, tpu.core_type = #tpu.core_type<tc>, window_params = [{transform_indices = @transform_0, window_bounds = array<i64: 4, 16, 128>}, {transform_indices = @transform_1, window_bounds = array<i64: 4, 16, 128>}, {transform_indices = @transform_2, window_bounds = array<i64: 4, 1, 128>}, {pipeline_mode = #tpu.pipeline_mode<synchronous>, transform_indices = @transform_3, window_bounds = array<i64: 128, 256>}, {pipeline_mode = #tpu.pipeline_mode<synchronous>, transform_indices = @transform_4, window_bounds = array<i64: 1, 256>}, {pipeline_mode = #tpu.pipeline_mode<synchronous>, transform_indices = @transform_5, window_bounds = array<i64: 128, 256>}, {pipeline_mode = #tpu.pipeline_mode<synchronous>, transform_indices = @transform_6, window_bounds = array<i64: 1, 256>}, {transform_indices = @transform_7, window_bounds = array<i64: 4, 3, 256>}]} {
    %c0 = arith.constant 0 : index
    %c0_0 = arith.constant 0 : index
    %0 = vector.load %arg4[%c0, %c0_0] : memref<128x256xf32, #tpu.memory_space<vmem>>, vector<128x256xf32>
    %1 = arith.truncf %0 : vector<128x256xf32> to vector<128x256xbf16>
    %c0_1 = arith.constant 0 : index
    %c0_2 = arith.constant 0 : index
    %2 = vector.load %arg6[%c0_1, %c0_2] : memref<128x256xf32, #tpu.memory_space<vmem>>, vector<128x256xf32>
    %3 = arith.truncf %2 : vector<128x256xf32> to vector<128x256xbf16>
    %c0_3 = arith.constant 0 : index
    %c0_4 = arith.constant 0 : index
    %4 = vector.load %arg5[%c0_3, %c0_4] : memref<1x256xf32, #tpu.memory_space<vmem>>, vector<1x256xf32>
    %c0_5 = arith.constant 0 : index
    %c0_6 = arith.constant 0 : index
    %5 = vector.load %arg7[%c0_5, %c0_6] : memref<1x256xf32, #tpu.memory_space<vmem>>, vector<1x256xf32>
    %c0_7 = arith.constant 0 : index
    %c0_8 = arith.constant 0 : index
    %c0_9 = arith.constant 0 : index
    %6 = vector.load %arg1[%c0_7, %c0_8, %c0_9] : memref<4x16x128xf32, #tpu.memory_space<vmem>>, vector<4x16x128xf32>
    %7 = arith.truncf %6 : vector<4x16x128xf32> to vector<4x16x128xbf16>
    %8 = vector.shape_cast %7 : vector<4x16x128xbf16> to vector<64x128xbf16>
    %cst = arith.constant dense<0.000000e+00> : vector<64x256xf32>
    %9 = tpu.matmul %8, %1, %cst {dimension_numbers = #tpu.dot_dimension_numbers<[1], [0], [0], [1], [0, 0, 1, 1], [], []>} : vector<64x128xbf16>, vector<128x256xbf16>, vector<64x256xf32> -> vector<64x256xf32>
    %10 = vector.broadcast %4 : vector<1x256xf32> to vector<64x256xf32>
    %11 = arith.addf %9, %10 : vector<64x256xf32>
    %12 = arith.mulf %11, %11 : vector<64x256xf32>
    %cst_10 = arith.constant dense<0.000000e+00> : vector<64xf32>
    %13 = vector.multi_reduction <add>, %12, %cst_10 [1] : vector<64x256xf32> to vector<64xf32>
    %14 = vector.shape_cast %13 : vector<64xf32> to vector<64x1xf32>
    %cst_11 = arith.constant 1.000000e-24 : f32
    %15 = vector.broadcast %cst_11 : f32 to vector<64x1xf32>
    %16 = arith.maximumf %14, %15 : vector<64x1xf32>
    %17 = math.rsqrt %16 : vector<64x1xf32>
    %18 = vector.broadcast %17 : vector<64x1xf32> to vector<64x256xf32>
    %19 = arith.mulf %11, %18 : vector<64x256xf32>
    %20 = vector.shape_cast %19 : vector<64x256xf32> to vector<4x16x256xf32>
    %cst_12 = arith.constant dense<0.000000e+00> : vector<4x256xf32>
    %21 = vector.multi_reduction <add>, %20, %cst_12 [1] : vector<4x16x256xf32> to vector<4x256xf32>
    %22 = vector.shape_cast %21 : vector<4x256xf32> to vector<4x1x256xf32>
    %cst_13 = arith.constant 6.250000e-02 : f32
    %23 = vector.broadcast %cst_13 : f32 to vector<4x1x256xf32>
    %24 = arith.mulf %22, %23 : vector<4x1x256xf32>
    %c0_14 = arith.constant 0 : index
    %c0_15 = arith.constant 0 : index
    %c0_16 = arith.constant 0 : index
    %25 = vector.load %arg2[%c0_14, %c0_15, %c0_16] : memref<4x16x128xf32, #tpu.memory_space<vmem>>, vector<4x16x128xf32>
    %26 = arith.truncf %25 : vector<4x16x128xf32> to vector<4x16x128xbf16>
    %27 = vector.shape_cast %26 : vector<4x16x128xbf16> to vector<64x128xbf16>
    %cst_17 = arith.constant dense<0.000000e+00> : vector<64x256xf32>
    %28 = tpu.matmul %27, %3, %cst_17 {dimension_numbers = #tpu.dot_dimension_numbers<[1], [0], [0], [1], [0, 0, 1, 1], [], []>} : vector<64x128xbf16>, vector<128x256xbf16>, vector<64x256xf32> -> vector<64x256xf32>
    %29 = vector.broadcast %5 : vector<1x256xf32> to vector<64x256xf32>
    %30 = arith.addf %28, %29 : vector<64x256xf32>
    %31 = arith.mulf %30, %30 : vector<64x256xf32>
    %cst_18 = arith.constant dense<0.000000e+00> : vector<64xf32>
    %32 = vector.multi_reduction <add>, %31, %cst_18 [1] : vector<64x256xf32> to vector<64xf32>
    %33 = vector.shape_cast %32 : vector<64xf32> to vector<64x1xf32>
    %cst_19 = arith.constant 1.000000e-24 : f32
    %34 = vector.broadcast %cst_19 : f32 to vector<64x1xf32>
    %35 = arith.maximumf %33, %34 : vector<64x1xf32>
    %36 = math.rsqrt %35 : vector<64x1xf32>
    %37 = vector.broadcast %36 : vector<64x1xf32> to vector<64x256xf32>
    %38 = arith.mulf %30, %37 : vector<64x256xf32>
    %39 = vector.shape_cast %38 : vector<64x256xf32> to vector<4x16x256xf32>
    %cst_20 = arith.constant dense<0.000000e+00> : vector<4x256xf32>
    %40 = vector.multi_reduction <add>, %39, %cst_20 [1] : vector<4x16x256xf32> to vector<4x256xf32>
    %41 = vector.shape_cast %40 : vector<4x256xf32> to vector<4x1x256xf32>
    %cst_21 = arith.constant 6.250000e-02 : f32
    %42 = vector.broadcast %cst_21 : f32 to vector<4x1x256xf32>
    %43 = arith.mulf %41, %42 : vector<4x1x256xf32>
    %c0_22 = arith.constant 0 : index
    %c0_23 = arith.constant 0 : index
    %c0_24 = arith.constant 0 : index
    %44 = vector.load %arg3[%c0_22, %c0_23, %c0_24] : memref<4x1x128xf32, #tpu.memory_space<vmem>>, vector<4x1x128xf32>
    %45 = vector.shape_cast %44 : vector<4x1x128xf32> to vector<4x128xf32>
    %46 = arith.truncf %45 : vector<4x128xf32> to vector<4x128xbf16>
    %cst_25 = arith.constant dense<0.000000e+00> : vector<4x256xf32>
    %47 = tpu.matmul %46, %3, %cst_25 {dimension_numbers = #tpu.dot_dimension_numbers<[1], [0], [0], [1], [0, 0, 1, 1], [], []>} : vector<4x128xbf16>, vector<128x256xbf16>, vector<4x256xf32> -> vector<4x256xf32>
    %48 = vector.broadcast %5 : vector<1x256xf32> to vector<4x256xf32>
    %49 = arith.addf %47, %48 : vector<4x256xf32>
    %50 = arith.mulf %49, %49 : vector<4x256xf32>
    %cst_26 = arith.constant dense<0.000000e+00> : vector<4xf32>
    %51 = vector.multi_reduction <add>, %50, %cst_26 [1] : vector<4x256xf32> to vector<4xf32>
    %52 = vector.shape_cast %51 : vector<4xf32> to vector<4x1xf32>
    %cst_27 = arith.constant 1.000000e-24 : f32
    %53 = vector.broadcast %cst_27 : f32 to vector<4x1xf32>
    %54 = arith.maximumf %52, %53 : vector<4x1xf32>
    %55 = math.rsqrt %54 : vector<4x1xf32>
    %56 = vector.broadcast %55 : vector<4x1xf32> to vector<4x256xf32>
    %57 = arith.mulf %49, %56 : vector<4x256xf32>
    %c0_28 = arith.constant 0 : index
    %c0_29 = arith.constant 0 : index
    %c0_30 = arith.constant 0 : index
    %58 = vector.load %arg8[%c0_28, %c0_29, %c0_30] : memref<4x3x256xf32, #tpu.memory_space<vmem>>, vector<4x1x256xf32>
    tpu.vector_store %arg8[%c0_28, %c0_29, %c0_30], %24 {strides = array<i32>} : memref<4x3x256xf32, #tpu.memory_space<vmem>>, vector<4x1x256xf32>,
    %c0_31 = arith.constant 0 : index
    %c1 = arith.constant 1 : index
    %c0_32 = arith.constant 0 : index
    %59 = vector.load %arg8[%c0_31, %c1, %c0_32] : memref<4x3x256xf32, #tpu.memory_space<vmem>>, vector<4x1x256xf32>
    tpu.vector_store %arg8[%c0_31, %c1, %c0_32], %43 {strides = array<i32>} : memref<4x3x256xf32, #tpu.memory_space<vmem>>, vector<4x1x256xf32>,
    %60 = vector.shape_cast %57 : vector<4x256xf32> to vector<4x1x256xf32>
    %c0_33 = arith.constant 0 : index
    %c2 = arith.constant 2 : index
    %c0_34 = arith.constant 0 : index
    %61 = vector.load %arg8[%c0_33, %c2, %c0_34] : memref<4x3x256xf32, #tpu.memory_space<vmem>>, vector<4x1x256xf32>
    tpu.vector_store %arg8[%c0_33, %c2, %c0_34], %60 {strides = array<i32>} : memref<4x3x256xf32, #tpu.memory_space<vmem>>, vector<4x1x256xf32>,
    return
  }
  func.func @transform_0(%arg0: i32) -> (i32, i32, i32) {
    %c0_i32 = arith.constant 0 : i32
    %c0_i32_0 = arith.constant 0 : i32
    %c0_i32_1 = arith.constant 0 : i32
    return %arg0, %c0_i32, %c0_i32_0 : i32, i32, i32
  }
  func.func @transform_1(%arg0: i32) -> (i32, i32, i32) {
    %c0_i32 = arith.constant 0 : i32
    %c0_i32_0 = arith.constant 0 : i32
    %c0_i32_1 = arith.constant 0 : i32
    return %arg0, %c0_i32, %c0_i32_0 : i32, i32, i32
  }
  func.func @transform_2(%arg0: i32) -> (i32, i32, i32) {
    %c0_i32 = arith.constant 0 : i32
    %c0_i32_0 = arith.constant 0 : i32
    %c0_i32_1 = arith.constant 0 : i32
    return %arg0, %c0_i32, %c0_i32_0 : i32, i32, i32
  }
  func.func @transform_3(%arg0: i32) -> (i32, i32) {
    %c0_i32 = arith.constant 0 : i32
    %c0_i32_0 = arith.constant 0 : i32
    %c0_i32_1 = arith.constant 0 : i32
    return %c0_i32, %c0_i32_0 : i32, i32
  }
  func.func @transform_4(%arg0: i32) -> (i32, i32) {
    %c0_i32 = arith.constant 0 : i32
    %c0_i32_0 = arith.constant 0 : i32
    %c0_i32_1 = arith.constant 0 : i32
    return %c0_i32, %c0_i32_0 : i32, i32
  }
  func.func @transform_5(%arg0: i32) -> (i32, i32) {
    %c0_i32 = arith.constant 0 : i32
    %c0_i32_0 = arith.constant 0 : i32
    %c0_i32_1 = arith.constant 0 : i32
    return %c0_i32, %c0_i32_0 : i32, i32
  }
  func.func @transform_6(%arg0: i32) -> (i32, i32) {
    %c0_i32 = arith.constant 0 : i32
    %c0_i32_0 = arith.constant 0 : i32
    %c0_i32_1 = arith.constant 0 : i32
    return %c0_i32, %c0_i32_0 : i32, i32
  }
  func.func @transform_7(%arg0: i32) -> (i32, i32, i32) {
    %c0_i32 = arith.constant 0 : i32
    %c0_i32_0 = arith.constant 0 : i32
    %c0_i32_1 = arith.constant 0 : i32
    return %arg0, %c0_i32, %c0_i32_0 : i32, i32, i32
  }
}

</mosaic_0001>

<llo_original>
// kernel: tpu_custom_call.1
$region0: #{tpu_custom_call.1}
  #allocation0 [shape = 'u32[]', space=smem, size = 0x4, offset = 0x4, fixed_abs, tag = 'smem constant byte address 0x4 - core index']
  #allocation1 [shape = 'u32[144,128]{1,0:T(1,128)}', space=vmem, size = 0x12000, scoped, tag = 'internal scratch']
  %s0 = inlined_call_operand.hbm [shape: f32[4,16,128], index: 0, kind: input, shape index: {}]
  %s1 = inlined_call_operand.hbm [shape: f32[4,16,128], index: 1, kind: input, shape index: {}]
  %s2 = inlined_call_operand.vmem [shape: f32[4,1,128], index: 2, kind: input, shape index: {}]
  %s3 = inlined_call_operand.hbm [shape: f32[128,256], index: 3, kind: input, shape index: {}]
  %s4 = inlined_call_operand.vmem [shape: f32[1,256], index: 4, kind: input, shape index: {}]
  %s5 = inlined_call_operand.hbm [shape: f32[128,256], index: 5, kind: input, shape index: {}]
  %s6 = inlined_call_operand.vmem [shape: f32[1,256], index: 6, kind: input, shape index: {}]
  %s7 = inlined_call_operand.vmem [shape: f32[4,3,256], index: 7, kind: output, shape index: {}]
  %s8 = sld [smem:[#allocation0]]
  $region54: #{tpu_custom_call.1} parent=0
    _
  %s10 = ssub.s32 1, %s8
  %s11 = scalar_select 0, %s10, %s8
  $region1: #{tpu_custom_call.1} parent=0
    #allocation2 [shape = 'u8[32768]{0}', space=vmem, size = 0x8000, scoped, tag = 'input window, operand 0, single buffered']
    #allocation3 [shape = 's32[1]{0}', space=sflag, size = 0x4, scoped, tag = 'scoped memory for tpu_custom_call.1']
    #allocation4 [shape = 'u8[32768]{0}', space=vmem, size = 0x8000, scoped, tag = 'input window, operand 1, single buffered']
    #allocation5 [shape = 's32[1]{0}', space=sflag, size = 0x4, scoped, tag = 'scoped memory for tpu_custom_call.1']
    #allocation6 [shape = 'u8[131072]{0}', space=vmem, size = 0x20000, scoped, tag = 'input window, operand 3, single buffered']
    #allocation7 [shape = 'u8[131072]{0}', space=vmem, size = 0x20000, scoped, tag = 'input window, operand 5, single buffered']
    #allocation8 [shape = 's32[1]{0}', space=sflag, size = 0x4, scoped, tag = 'scoped memory for tpu_custom_call.1']
    %12 = vsyncpa [#allocation3], 0
    %13 = vsyncpa [#allocation5], 0
    %14 = vsyncpa [#allocation8], 0
    // Predicated region
    $region2: #{tpu_custom_call.1} parent=1 // pred_check
      _
    $region3: #{tpu_custom_call.1} parent=1 // pred_check_branch
      %16 = sbr.rel (0) target = $region5
    $region4: #{tpu_custom_call.1} parent=1 // pred_region
      %s18 = ssub.s32 1024, 1024
      %19 = vsyncadd [#allocation3], %s18
      %s20 = sshll.u32 [#allocation2], 4
      %s21 = int_to_ptr.vmem [resolvable:$true] %s20
      %26 = dma.hbm_to_vmem [thread:$0]  %s0, 1024, %s21, [#allocation3], 128, 128, 8
    $region5: #{tpu_custom_call.1} parent=1 // pred_fallthru
      _
    // Predicated region
    $region6: #{tpu_custom_call.1} parent=1 // pred_check
      _
    $region7: #{tpu_custom_call.1} parent=1 // pred_check_branch
      %28 = sbr.rel (0) target = $region9
    $region8: #{tpu_custom_call.1} parent=1 // pred_region
      %s30 = ssub.s32 1024, 1024
      %31 = vsyncadd [#allocation5], %s30
      %s32 = sshll.u32 [#allocation4], 4
      %s33 = int_to_ptr.vmem [resolvable:$true] %s32
      %38 = dma.hbm_to_vmem [thread:$0]  %s1, 1024, %s33, [#allocation5], 128, 128, 8
    $region9: #{tpu_custom_call.1} parent=1 // pred_fallthru
      _
    // Predicated region
    $region10: #{tpu_custom_call.1} parent=1 // pred_check
      _
    $region11: #{tpu_custom_call.1} parent=1 // pred_check_branch
      %40 = sbr.rel (0) target = $region13
    $region12: #{tpu_custom_call.1} parent=1 // pred_region
      _
    $region13: #{tpu_custom_call.1} parent=1 // pred_fallthru
      _
    // Predicated region
    $region14: #{tpu_custom_call.1} parent=1 // pred_check
      _
    $region15: #{tpu_custom_call.1} parent=1 // pred_check_branch
      %42 = sbr.rel (0) target = $region17
    $region16: #{tpu_custom_call.1} parent=1 // pred_region
      %s44 = ssub.s32 4096, 4096
      %45 = vsyncadd [#allocation5], %s44
      %s46 = sshll.u32 [#allocation6], 4
      %s47 = int_to_ptr.vmem [resolvable:$true] %s46
      %52 = dma.hbm_to_vmem [thread:$0]  %s3, 4096, %s47, [#allocation5], 256, 256, 16
    $region17: #{tpu_custom_call.1} parent=1 // pred_fallthru
      _
    // Predicated region
    $region18: #{tpu_custom_call.1} parent=1 // pred_check
      _
    $region19: #{tpu_custom_call.1} parent=1 // pred_check_branch
      %54 = sbr.rel (0) target = $region21
    $region20: #{tpu_custom_call.1} parent=1 // pred_region
      _
    $region21: #{tpu_custom_call.1} parent=1 // pred_fallthru
      _
    // Predicated region
    $region22: #{tpu_custom_call.1} parent=1 // pred_check
      _
    $region23: #{tpu_custom_call.1} parent=1 // pred_check_branch
      %56 = sbr.rel (0) target = $region25
    $region24: #{tpu_custom_call.1} parent=1 // pred_region
      %s58 = ssub.s32 4096, 4096
      %59 = vsyncadd [#allocation8], %s58
      %s60 = sshll.u32 [#allocation7], 4
      %s61 = int_to_ptr.vmem [resolvable:$true] %s60
      %66 = dma.hbm_to_vmem [thread:$0]  %s5, 4096, %s61, [#allocation8], 256, 256, 16
    $region25: #{tpu_custom_call.1} parent=1 // pred_fallthru
      _
    // Predicated region
    $region26: #{tpu_custom_call.1} parent=1 // pred_check
      _
    $region27: #{tpu_custom_call.1} parent=1 // pred_check_branch
      %68 = sbr.rel (0) target = $region29
    $region28: #{tpu_custom_call.1} parent=1 // pred_region
      _
    $region29: #{tpu_custom_call.1} parent=1 // pred_fallthru
      _
    // Predicated region
    $region30: #{tpu_custom_call.1} parent=1 // pred_check
      _
    $region31: #{tpu_custom_call.1} parent=1 // pred_check_branch
      %70 = sbr.rel (0) target = $region33
    $region32: #{tpu_custom_call.1} parent=1 // pred_region
      %71 = dma.done [#allocation3], 1024
    $region33: #{tpu_custom_call.1} parent=1 // pred_fallthru
      _
    // Predicated region
    $region34: #{tpu_custom_call.1} parent=1 // pred_check
      _
    $region35: #{tpu_custom_call.1} parent=1 // pred_check_branch
      %73 = sbr.rel (0) target = $region37
    $region36: #{tpu_custom_call.1} parent=1 // pred_region
      %74 = dma.done [#allocation5], 1024
    $region37: #{tpu_custom_call.1} parent=1 // pred_fallthru
      _
    // Predicated region
    $region38: #{tpu_custom_call.1} parent=1 // pred_check
      _
    $region39: #{tpu_custom_call.1} parent=1 // pred_check_branch
      %76 = sbr.rel (0) target = $region41
    $region40: #{tpu_custom_call.1} parent=1 // pred_region
      %77 = dma.done [#allocation5], 4096
    $region41: #{tpu_custom_call.1} parent=1 // pred_fallthru
      _
    // Predicated region
    $region42: #{tpu_custom_call.1} parent=1 // pred_check
      _
    $region43: #{tpu_custom_call.1} parent=1 // pred_check_branch
      %79 = sbr.rel (0) target = $region45
    $region44: #{tpu_custom_call.1} parent=1 // pred_region
      %80 = dma.done [#allocation8], 4096
    $region45: #{tpu_custom_call.1} parent=1 // pred_fallthru
      _
    %v82 = vld [vmem:[#allocation6] sm:$0xff]
    %v83 = vld [vmem:[#allocation6 + $0x8] sm:$0xff]
    %v84 = vld [vmem:[#allocation6 + $0x10] sm:$0xff]
    %v85 = vld [vmem:[#allocation6 + $0x18] sm:$0xff]
    %v86 = vld [vmem:[#allocation6 + $0x20] sm:$0xff]
    %v87 = vld [vmem:[#allocation6 + $0x28] sm:$0xff]
    %v88 = vld [vmem:[#allocation6 + $0x30] sm:$0xff]
    %v89 = vld [vmem:[#allocation6 + $0x38] sm:$0xff]
    %v90 = vld [vmem:[#allocation6 + $0x40] sm:$0xff]
    %v91 = vld [vmem:[#allocation6 + $0x48] sm:$0xff]
    %v92 = vld [vmem:[#allocation6 + $0x50] sm:$0xff]
    %v93 = vld [vmem:[#allocation6 + $0x58] sm:$0xff]
    %v94 = vld [vmem:[#allocation6 + $0x60] sm:$0xff]
    %v95 = vld [vmem:[#allocation6 + $0x68] sm:$0xff]
    %v96 = vld [vmem:[#allocation6 + $0x70] sm:$0xff]
    %v97 = vld [vmem:[#allocation6 + $0x78] sm:$0xff]
    %v98 = vld [vmem:[#allocation6 + $0x80] sm:$0xff]
    %v99 = vld [vmem:[#allocation6 + $0x88] sm:$0xff]
    %v100 = vld [vmem:[#allocation6 + $0x90] sm:$0xff]
    %v101 = vld [vmem:[#allocation6 + $0x98] sm:$0xff]
    %v102 = vld [vmem:[#allocation6 + $0xa0] sm:$0xff]
    %v103 = vld [vmem:[#allocation6 + $0xa8] sm:$0xff]
    %v104 = vld [vmem:[#allocation6 + $0xb0] sm:$0xff]
    %v105 = vld [vmem:[#allocation6 + $0xb8] sm:$0xff]
    %v106 = vld [vmem:[#allocation6 + $0xc0] sm:$0xff]
    %v107 = vld [vmem:[#allocation6 + $0xc8] sm:$0xff]
    %v108 = vld [vmem:[#allocation6 + $0xd0] sm:$0xff]
    %v109 = vld [vmem:[#allocation6 + $0xd8] sm:$0xff]
    %v110 = vld [vmem:[#allocation6 + $0xe0] sm:$0xff]
    %v111 = vld [vmem:[#allocation6 + $0xe8] sm:$0xff]
    %v112 = vld [vmem:[#allocation6 + $0xf0] sm:$0xff]
    %v113 = vld [vmem:[#allocation6 + $0xf8] sm:$0xff]
    %v114 = vpack.c.bf16 %v84, %v82
    %v115 = vpack.c.bf16 %v85, %v83
    %v116 = vpack.c.bf16 %v88, %v86
    %v117 = vpack.c.bf16 %v89, %v87
    %v118 = vpack.c.bf16 %v92, %v90
    %v119 = vpack.c.bf16 %v93, %v91
    %v120 = vpack.c.bf16 %v96, %v94
    %v121 = vpack.c.bf16 %v97, %v95
    %v122 = vpack.c.bf16 %v100, %v98
    %v123 = vpack.c.bf16 %v101, %v99
    %v124 = vpack.c.bf16 %v104, %v102
    %v125 = vpack.c.bf16 %v105, %v103
    %v126 = vpack.c.bf16 %v108, %v106
    %v127 = vpack.c.bf16 %v109, %v107
    %v128 = vpack.c.bf16 %v112, %v110
    %v129 = vpack.c.bf16 %v113, %v111
    %v130 = vld [vmem:[#allocation7] sm:$0xff]
    %v131 = vld [vmem:[#allocation7 + $0x8] sm:$0xff]
    %v132 = vld [vmem:[#allocation7 + $0x10] sm:$0xff]
    %v133 = vld [vmem:[#allocation7 + $0x18] sm:$0xff]
    %v134 = vld [vmem:[#allocation7 + $0x20] sm:$0xff]
    %v135 = vld [vmem:[#allocation7 + $0x28] sm:$0xff]
    %v136 = vld [vmem:[#allocation7 + $0x30] sm:$0xff]
    %v137 = vld [vmem:[#allocation7 + $0x38] sm:$0xff]
    %v138 = vld [vmem:[#allocation7 + $0x40] sm:$0xff]
    %v139 = vld [vmem:[#allocation7 + $0x48] sm:$0xff]
    %v140 = vld [vmem:[#allocation7 + $0x50] sm:$0xff]
    %v141 = vld [vmem:[#allocation7 + $0x58] sm:$0xff]
    %v142 = vld [vmem:[#allocation7 + $0x60] sm:$0xff]
    %v143 = vld [vmem:[#allocation7 + $0x68] sm:$0xff]
    %v144 = vld [vmem:[#allocation7 + $0x70] sm:$0xff]
    %v145 = vld [vmem:[#allocation7 + $0x78] sm:$0xff]
    %v146 = vld [vmem:[#allocation7 + $0x80] sm:$0xff]
    %v147 = vld [vmem:[#allocation7 + $0x88] sm:$0xff]
    %v148 = vld [vmem:[#allocation7 + $0x90] sm:$0xff]
    %v149 = vld [vmem:[#allocation7 + $0x98] sm:$0xff]
    %v150 = vld [vmem:[#allocation7 + $0xa0] sm:$0xff]
    %v151 = vld [vmem:[#allocation7 + $0xa8] sm:$0xff]
    %v152 = vld [vmem:[#allocation7 + $0xb0] sm:$0xff]
    %v153 = vld [vmem:[#allocation7 + $0xb8] sm:$0xff]
    %v154 = vld [vmem:[#allocation7 + $0xc0] sm:$0xff]
    %v155 = vld [vmem:[#allocation7 + $0xc8] sm:$0xff]
    %v156 = vld [vmem:[#allocation7 + $0xd0] sm:$0xff]
    %v157 = vld [vmem:[#allocation7 + $0xd8] sm:$0xff]
    %v158 = vld [vmem:[#allocation7 + $0xe0] sm:$0xff]
    %v159 = vld [vmem:[#allocation7 + $0xe8] sm:$0xff]
    %v160 = vld [vmem:[#allocation7 + $0xf0] sm:$0xff]
    %v161 = vld [vmem:[#allocation7 + $0xf8] sm:$0xff]
    %v162 = vpack.c.bf16 %v132, %v130
    %v163 = vpack.c.bf16 %v133, %v131
    %v164 = vpack.c.bf16 %v136, %v134
    %v165 = vpack.c.bf16 %v137, %v135
    %v166 = vpack.c.bf16 %v140, %v138
    %v167 = vpack.c.bf16 %v141, %v139
    %v168 = vpack.c.bf16 %v144, %v142
    %v169 = vpack.c.bf16 %v145, %v143
    %v170 = vpack.c.bf16 %v148, %v146
    %v171 = vpack.c.bf16 %v149, %v147
    %v172 = vpack.c.bf16 %v152, %v150
    %v173 = vpack.c.bf16 %v153, %v151
    %v174 = vpack.c.bf16 %v156, %v154
    %v175 = vpack.c.bf16 %v157, %v155
    %v176 = vpack.c.bf16 %v160, %v158
    %v177 = vpack.c.bf16 %v161, %v159
    %v178 = vld [vmem:[%s4] sm:$0x3]
    %v179 = vld [vmem:[%s6] sm:$0x3]
    %v180 = vld [vmem:[#allocation2] sm:$0xff]
    %v181 = vld [vmem:[#allocation2 + $0x8] sm:$0xff]
    %v182 = vld [vmem:[#allocation2 + $0x10] sm:$0xff]
    %v183 = vld [vmem:[#allocation2 + $0x18] sm:$0xff]
    %v184 = vld [vmem:[#allocation2 + $0x20] sm:$0xff]
    %v185 = vld [vmem:[#allocation2 + $0x28] sm:$0xff]
    %v186 = vld [vmem:[#allocation2 + $0x30] sm:$0xff]
    %v187 = vld [vmem:[#allocation2 + $0x38] sm:$0xff]
    %v188 = vpack.c.bf16 %v181, %v180
    %v189 = vpack.c.bf16 %v183, %v182
    %v190 = vpack.c.bf16 %v185, %v184
    %v191 = vpack.c.bf16 %v187, %v186
    %v193 = vlaneseq
    %v194 = vshrl.u32 %v193, 7
    %v195 = vsub.s32 0, %v194
    %v196 = vrot.slane %v178, %v195
    %v197 = vlaneseq
    %v198 = vshrl.u32 %v197, 7
    %v199 = vsub.s32 1, %v198
    %v200 = vrot.slane %v178, %v199
    %203 = vmatprep.subr.bf16.mxu0 %v115
    %204 = vmatpush1.bf16.msra.mxu0 %v114
    %205 = vmatprep.subr.bf16.mxu0 %v117
    %206 = vmatpush1.bf16.msra.mxu0 %v116
    %207 = vmatprep.subr.bf16.mxu0 %v119
    %208 = vmatpush1.bf16.msra.mxu0 %v118
    %209 = vmatprep.subr.bf16.mxu0 %v121
    %210 = vmatpush1.bf16.msra.mxu0 %v120
    %211 = vmatprep.subr.bf16.mxu0 %v123
    %212 = vmatpush1.bf16.msra.mxu0 %v122
    %213 = vmatprep.subr.bf16.mxu0 %v125
    %214 = vmatpush1.bf16.msra.mxu0 %v124
    %215 = vmatprep.subr.bf16.mxu0 %v127
    %216 = vmatpush1.bf16.msra.mxu0 %v126
    %217 = vmatprep.subr.bf16.mxu0 %v129
    %218 = vmatpush1.bf16.msra.mxu0 %v128
    %219 = vmatprep.subr.bf16.mxu0 0
    %220 = vmatpush1.bf16.msra.mxu0 0
    %221 = vmatprep.subr.bf16.mxu0 0
    %222 = vmatpush1.bf16.msra.mxu0 0
    %223 = vmatprep.subr.bf16.mxu0 0
    %224 = vmatpush1.bf16.msra.mxu0 0
    %225 = vmatprep.subr.bf16.mxu0 0
    %226 = vmatpush1.bf16.msra.mxu0 0
    %227 = vmatprep.subr.bf16.mxu0 0
    %228 = vmatpush1.bf16.msra.mxu0 0
    %229 = vmatprep.subr.bf16.mxu0 0
    %230 = vmatpush1.bf16.msra.mxu0 0
    %231 = vmatprep.subr.bf16.mxu0 0
    %232 = vmatpush1.bf16.msra.mxu0 0
    %233 = vmatprep.subr.bf16.mxu0 0
    %234 = vmatpush1.bf16.msra.mxu0 0
    %235 = vmatprep.mubr.bf16.mxu0 0
    %236 = vmatmul.mubr.bf16.gmra.mrb[0].mxu0 %v188
    %v237 = vpop.f32.mrb[0].mxu0
    %v238 = vadd.f32 %v196, %v237
    %v239 = vpop.f32.mrb[0].mxu0
    %v240 = vadd.f32 %v200, %v239
    %v241 = vpop.f32.mrb[0].mxu0
    %v242 = vadd.f32 %v196, %v241
    %v243 = vpop.f32.mrb[0].mxu0
    %v244 = vadd.f32 %v200, %v243
    %245 = vmatprep.mubr.bf16.mxu0 0
    %246 = vmatmul.mubr.bf16.gmra.mrb[0].mxu0 %v189
    %v247 = vpop.f32.mrb[0].mxu0
    %v248 = vadd.f32 %v196, %v247
    %v249 = vpop.f32.mrb[0].mxu0
    %v250 = vadd.f32 %v200, %v249
    %v251 = vpop.f32.mrb[0].mxu0
    %v252 = vadd.f32 %v196, %v251
    %v253 = vpop.f32.mrb[0].mxu0
    %v254 = vadd.f32 %v200, %v253
    %255 = vmatprep.mubr.bf16.mxu0 0
    %256 = vmatmul.mubr.bf16.gmra.mrb[0].mxu0 %v190
    %v257 = vpop.f32.mrb[0].mxu0
    %v258 = vadd.f32 %v196, %v257
    %v259 = vpop.f32.mrb[0].mxu0
    %v260 = vadd.f32 %v200, %v259
    %v261 = vpop.f32.mrb[0].mxu0
    %v262 = vadd.f32 %v196, %v261
    %v263 = vpop.f32.mrb[0].mxu0
    %v264 = vadd.f32 %v200, %v263
    %265 = vmatprep.mubr.bf16.mxu0 0
    %266 = vmatmul.mubr.bf16.gmra.mrb[0].mxu0 %v191
    %v267 = vpop.f32.mrb[0].mxu0
    %v268 = vadd.f32 %v196, %v267
    %v269 = vpop.f32.mrb[0].mxu0
    %v270 = vadd.f32 %v200, %v269
    %v271 = vpop.f32.mrb[0].mxu0
    %v272 = vadd.f32 %v196, %v271
    %v273 = vpop.f32.mrb[0].mxu0
    %v274 = vadd.f32 %v200, %v273
    %275 = vdwg.mxu0
    %v276 = vmul.f32 %v238, %v238
    %v277 = vmul.f32 %v240, %v240
    %v278 = vmul.f32 %v242, %v242
    %v279 = vmul.f32 %v244, %v244
    %v280 = vmul.f32 %v248, %v248
    %v281 = vmul.f32 %v250, %v250
    %v282 = vmul.f32 %v252, %v252
    %v283 = vmul.f32 %v254, %v254
    %v284 = vmul.f32 %v258, %v258
    %v285 = vmul.f32 %v260, %v260
    %v286 = vmul.f32 %v262, %v262
    %v287 = vmul.f32 %v264, %v264
    %v288 = vmul.f32 %v268, %v268
    %v289 = vmul.f32 %v270, %v270
    %v290 = vmul.f32 %v272, %v272
    %v291 = vmul.f32 %v274, %v274
    %v292 = vadd.f32 %v276, %v277
    %293 = vadd.xlane.f32.xlu0 %v292
    %v294 = vpop.xlane.xlu0 %293
    %v295 = vadd.f32 %v278, %v279
    %296 = vadd.xlane.f32.xlu0 %v295
    %v297 = vpop.xlane.xlu0 %296
    %v298 = vadd.f32 %v280, %v281
    %299 = vadd.xlane.f32.xlu0 %v298
    %v300 = vpop.xlane.xlu0 %299
    %v301 = vadd.f32 %v282, %v283
    %302 = vadd.xlane.f32.xlu0 %v301
    %v303 = vpop.xlane.xlu0 %302
    %v304 = vadd.f32 %v284, %v285
    %305 = vadd.xlane.f32.xlu0 %v304
    %v306 = vpop.xlane.xlu0 %305
    %v307 = vadd.f32 %v286, %v287
    %308 = vadd.xlane.f32.xlu0 %v307
    %v309 = vpop.xlane.xlu0 %308
    %v310 = vadd.f32 %v288, %v289
    %311 = vadd.xlane.f32.xlu0 %v310
    %v312 = vpop.xlane.xlu0 %311
    %v313 = vadd.f32 %v290, %v291
    %314 = vadd.xlane.f32.xlu0 %v313
    %v315 = vpop.xlane.xlu0 %314
    %v316 = vmax.f32 %v294, 1e-24
    %v317 = vmax.f32 %v297, 1e-24
    %v318 = vmax.f32 %v300, 1e-24
    %v319 = vmax.f32 %v303, 1e-24
    %v320 = vmax.f32 %v306, 1e-24
    %v321 = vmax.f32 %v309, 1e-24
    %v322 = vmax.f32 %v312, 1e-24
    %v323 = vmax.f32 %v315, 1e-24
    %v324 = vrsqrt.pop %v316
    %v325 = vrsqrt.pop %v317
    %v326 = vrsqrt.pop %v318
    %v327 = vrsqrt.pop %v319
    %v328 = vrsqrt.pop %v320
    %v329 = vrsqrt.pop %v321
    %v330 = vrsqrt.pop %v322
    %v331 = vrsqrt.pop %v323
    %v332 = vmul.f32 %v238, %v324
    %v333 = vmul.f32 %v240, %v324
    %v334 = vmul.f32 %v242, %v325
    %v335 = vmul.f32 %v244, %v325
    %v336 = vmul.f32 %v248, %v326
    %v337 = vmul.f32 %v250, %v326
    %v338 = vmul.f32 %v252, %v327
    %v339 = vmul.f32 %v254, %v327
    %v340 = vmul.f32 %v258, %v328
    %v341 = vmul.f32 %v260, %v328
    %v342 = vmul.f32 %v262, %v329
    %v343 = vmul.f32 %v264, %v329
    %v344 = vmul.f32 %v268, %v330
    %v345 = vmul.f32 %v270, %v330
    %v346 = vmul.f32 %v272, %v331
    %v347 = vmul.f32 %v274, %v331
    %v348 = vadd.f32 %v332, %v334
    %v349 = vrot.slane %v348, 4
    %v350 = vadd.f32 %v348, %v349
    %v351 = vrot.slane %v350, 2
    %v352 = vadd.f32 %v350, %v351
    %v353 = vrot.slane %v352, 1
    %v354 = vadd.f32 %v352, %v353
    %v355 = vadd.f32 %v333, %v335
    %v356 = vrot.slane %v355, 4
    %v357 = vadd.f32 %v355, %v356
    %v358 = vrot.slane %v357, 2
    %v359 = vadd.f32 %v357, %v358
    %v360 = vrot.slane %v359, 1
    %v361 = vadd.f32 %v359, %v360
    %v362 = vadd.f32 %v336, %v338
    %v363 = vrot.slane %v362, 4
    %v364 = vadd.f32 %v362, %v363
    %v365 = vrot.slane %v364, 2
    %v366 = vadd.f32 %v364, %v365
    %v367 = vrot.slane %v366, 1
    %v368 = vadd.f32 %v366, %v367
    %v369 = vadd.f32 %v337, %v339
    %v370 = vrot.slane %v369, 4
    %v371 = vadd.f32 %v369, %v370
    %v372 = vrot.slane %v371, 2
    %v373 = vadd.f32 %v371, %v372
    %v374 = vrot.slane %v373, 1
    %v375 = vadd.f32 %v373, %v374
    %v376 = vadd.f32 %v340, %v342
    %v377 = vrot.slane %v376, 4
    %v378 = vadd.f32 %v376, %v377
    %v379 = vrot.slane %v378, 2
    %v380 = vadd.f32 %v378, %v379
    %v381 = vrot.slane %v380, 1
    %v382 = vadd.f32 %v380, %v381
    %v383 = vadd.f32 %v341, %v343
    %v384 = vrot.slane %v383, 4
    %v385 = vadd.f32 %v383, %v384
    %v386 = vrot.slane %v385, 2
    %v387 = vadd.f32 %v385, %v386
    %v388 = vrot.slane %v387, 1
    %v389 = vadd.f32 %v387, %v388
    %v390 = vadd.f32 %v344, %v346
    %v391 = vrot.slane %v390, 4
    %v392 = vadd.f32 %v390, %v391
    %v393 = vrot.slane %v392, 2
    %v394 = vadd.f32 %v392, %v393
    %v395 = vrot.slane %v394, 1
    %v396 = vadd.f32 %v394, %v395
    %v397 = vadd.f32 %v345, %v347
    %v398 = vrot.slane %v397, 4
    %v399 = vadd.f32 %v397, %v398
    %v400 = vrot.slane %v399, 2
    %v401 = vadd.f32 %v399, %v400
    %v402 = vrot.slane %v401, 1
    %v403 = vadd.f32 %v401, %v402
    %v404 = vmul.f32 %v354, 0.0625
    %v405 = vmul.f32 %v361, 0.0625
    %v406 = vmul.f32 %v368, 0.0625
    %v407 = vmul.f32 %v375, 0.0625
    %v408 = vmul.f32 %v382, 0.0625
    %v409 = vmul.f32 %v389, 0.0625
    %v410 = vmul.f32 %v396, 0.0625
    %v411 = vmul.f32 %v403, 0.0625
    %v412 = vld [vmem:[#allocation4] sm:$0xff]
    %v413 = vld [vmem:[#allocation4 + $0x8] sm:$0xff]
    %v414 = vld [vmem:[#allocation4 + $0x10] sm:$0xff]
    %v415 = vld [vmem:[#allocation4 + $0x18] sm:$0xff]
    %v416 = vld [vmem:[#allocation4 + $0x20] sm:$0xff]
    %v417 = vld [vmem:[#allocation4 + $0x28] sm:$0xff]
    %v418 = vld [vmem:[#allocation4 + $0x30] sm:$0xff]
    %v419 = vld [vmem:[#allocation4 + $0x38] sm:$0xff]
    %v420 = vpack.c.bf16 %v413, %v412
    %v421 = vpack.c.bf16 %v415, %v414
    %v422 = vpack.c.bf16 %v417, %v416
    %v423 = vpack.c.bf16 %v419, %v418
    %v425 = vlaneseq
    %v426 = vshrl.u32 %v425, 7
    %v427 = vsub.s32 0, %v426
    %v428 = vrot.slane %v179, %v427
    %v429 = vlaneseq
    %v430 = vshrl.u32 %v429, 7
    %v431 = vsub.s32 1, %v430
    %v432 = vrot.slane %v179, %v431
    %435 = vmatprep.subr.bf16.mxu0 %v163
    %436 = vmatpush1.bf16.msra.mxu0 %v162
    %437 = vmatprep.subr.bf16.mxu0 %v165
    %438 = vmatpush1.bf16.msra.mxu0 %v164
    %439 = vmatprep.subr.bf16.mxu0 %v167
    %440 = vmatpush1.bf16.msra.mxu0 %v166
    %441 = vmatprep.subr.bf16.mxu0 %v169
    %442 = vmatpush1.bf16.msra.mxu0 %v168
    %443 = vmatprep.subr.bf16.mxu0 %v171
    %444 = vmatpush1.bf16.msra.mxu0 %v170
    %445 = vmatprep.subr.bf16.mxu0 %v173
    %446 = vmatpush1.bf16.msra.mxu0 %v172
    %447 = vmatprep.subr.bf16.mxu0 %v175
    %448 = vmatpush1.bf16.msra.mxu0 %v174
    %449 = vmatprep.subr.bf16.mxu0 %v177
    %450 = vmatpush1.bf16.msra.mxu0 %v176
    %451 = vmatprep.subr.bf16.mxu0 0
    %452 = vmatpush1.bf16.msra.mxu0 0
    %453 = vmatprep.subr.bf16.mxu0 0
    %454 = vmatpush1.bf16.msra.mxu0 0
    %455 = vmatprep.subr.bf16.mxu0 0
    %456 = vmatpush1.bf16.msra.mxu0 0
    %457 = vmatprep.subr.bf16.mxu0 0
    %458 = vmatpush1.bf16.msra.mxu0 0
    %459 = vmatprep.subr.bf16.mxu0 0
    %460 = vmatpush1.bf16.msra.mxu0 0
    %461 = vmatprep.subr.bf16.mxu0 0
    %462 = vmatpush1.bf16.msra.mxu0 0
    %463 = vmatprep.subr.bf16.mxu0 0
    %464 = vmatpush1.bf16.msra.mxu0 0
    %465 = vmatprep.subr.bf16.mxu0 0
    %466 = vmatpush1.bf16.msra.mxu0 0
    %467 = vmatprep.mubr.bf16.mxu0 0
    %468 = vmatmul.mubr.bf16.gmra.mrb[0].mxu0 %v420
    %v469 = vpop.f32.mrb[0].mxu0
    %v470 = vadd.f32 %v428, %v469
    %v471 = vpop.f32.mrb[0].mxu0
    %v472 = vadd.f32 %v432, %v471
    %v473 = vpop.f32.mrb[0].mxu0
    %v474 = vadd.f32 %v428, %v473
    %v475 = vpop.f32.mrb[0].mxu0
    %v476 = vadd.f32 %v432, %v475
    %477 = vmatprep.mubr.bf16.mxu0 0
    %478 = vmatmul.mubr.bf16.gmra.mrb[0].mxu0 %v421
    %v479 = vpop.f32.mrb[0].mxu0
    %v480 = vadd.f32 %v428, %v479
    %v481 = vpop.f32.mrb[0].mxu0
    %v482 = vadd.f32 %v432, %v481
    %v483 = vpop.f32.mrb[0].mxu0
    %v484 = vadd.f32 %v428, %v483
    %v485 = vpop.f32.mrb[0].mxu0
    %v486 = vadd.f32 %v432, %v485
    %487 = vmatprep.mubr.bf16.mxu0 0
    %488 = vmatmul.mubr.bf16.gmra.mrb[0].mxu0 %v422
    %v489 = vpop.f32.mrb[0].mxu0
    %v490 = vadd.f32 %v428, %v489
    %v491 = vpop.f32.mrb[0].mxu0
    %v492 = vadd.f32 %v432, %v491
    %v493 = vpop.f32.mrb[0].mxu0
    %v494 = vadd.f32 %v428, %v493
    %v495 = vpop.f32.mrb[0].mxu0
    %v496 = vadd.f32 %v432, %v495
    %497 = vmatprep.mubr.bf16.mxu0 0
    %498 = vmatmul.mubr.bf16.gmra.mrb[0].mxu0 %v423
    %v499 = vpop.f32.mrb[0].mxu0
    %v500 = vadd.f32 %v428, %v499
    %v501 = vpop.f32.mrb[0].mxu0
    %v502 = vadd.f32 %v432, %v501
    %v503 = vpop.f32.mrb[0].mxu0
    %v504 = vadd.f32 %v428, %v503
    %v505 = vpop.f32.mrb[0].mxu0
    %v506 = vadd.f32 %v432, %v505
    %507 = vdwg.mxu0
    %v508 = vmul.f32 %v470, %v470
    %v509 = vmul.f32 %v472, %v472
    %v510 = vmul.f32 %v474, %v474
    %v511 = vmul.f32 %v476, %v476
    %v512 = vmul.f32 %v480, %v480
    %v513 = vmul.f32 %v482, %v482
    %v514 = vmul.f32 %v484, %v484
    %v515 = vmul.f32 %v486, %v486
    %v516 = vmul.f32 %v490, %v490
    %v517 = vmul.f32 %v492, %v492
    %v518 = vmul.f32 %v494, %v494
    %v519 = vmul.f32 %v496, %v496
    %v520 = vmul.f32 %v500, %v500
    %v521 = vmul.f32 %v502, %v502
    %v522 = vmul.f32 %v504, %v504
    %v523 = vmul.f32 %v506, %v506
    %v524 = vadd.f32 %v508, %v509
    %525 = vadd.xlane.f32.xlu0 %v524
    %v526 = vpop.xlane.xlu0 %525
    %v527 = vadd.f32 %v510, %v511
    %528 = vadd.xlane.f32.xlu0 %v527
    %v529 = vpop.xlane.xlu0 %528
    %v530 = vadd.f32 %v512, %v513
    %531 = vadd.xlane.f32.xlu0 %v530
    %v532 = vpop.xlane.xlu0 %531
    %v533 = vadd.f32 %v514, %v515
    %534 = vadd.xlane.f32.xlu0 %v533
    %v535 = vpop.xlane.xlu0 %534
    %v536 = vadd.f32 %v516, %v517
    %537 = vadd.xlane.f32.xlu0 %v536
    %v538 = vpop.xlane.xlu0 %537
    %v539 = vadd.f32 %v518, %v519
    %540 = vadd.xlane.f32.xlu0 %v539
    %v541 = vpop.xlane.xlu0 %540
    %v542 = vadd.f32 %v520, %v521
    %543 = vadd.xlane.f32.xlu0 %v542
    %v544 = vpop.xlane.xlu0 %543
    %v545 = vadd.f32 %v522, %v523
    %546 = vadd.xlane.f32.xlu0 %v545
    %v547 = vpop.xlane.xlu0 %546
    %v548 = vmax.f32 %v526, 1e-24
    %v549 = vmax.f32 %v529, 1e-24
    %v550 = vmax.f32 %v532, 1e-24
    %v551 = vmax.f32 %v535, 1e-24
    %v552 = vmax.f32 %v538, 1e-24
    %v553 = vmax.f32 %v541, 1e-24
    %v554 = vmax.f32 %v544, 1e-24
    %v555 = vmax.f32 %v547, 1e-24
    %v556 = vrsqrt.pop %v548
    %v557 = vrsqrt.pop %v549
    %v558 = vrsqrt.pop %v550
    %v559 = vrsqrt.pop %v551
    %v560 = vrsqrt.pop %v552
    %v561 = vrsqrt.pop %v553
    %v562 = vrsqrt.pop %v554
    %v563 = vrsqrt.pop %v555
    %v564 = vmul.f32 %v470, %v556
    %v565 = vmul.f32 %v472, %v556
    %v566 = vmul.f32 %v474, %v557
    %v567 = vmul.f32 %v476, %v557
    %v568 = vmul.f32 %v480, %v558
    %v569 = vmul.f32 %v482, %v558
    %v570 = vmul.f32 %v484, %v559
    %v571 = vmul.f32 %v486, %v559
    %v572 = vmul.f32 %v490, %v560
    %v573 = vmul.f32 %v492, %v560
    %v574 = vmul.f32 %v494, %v561
    %v575 = vmul.f32 %v496, %v561
    %v576 = vmul.f32 %v500, %v562
    %v577 = vmul.f32 %v502, %v562
    %v578 = vmul.f32 %v504, %v563
    %v579 = vmul.f32 %v506, %v563
    %v580 = vadd.f32 %v564, %v566
    %v581 = vrot.slane %v580, 4
    %v582 = vadd.f32 %v580, %v581
    %v583 = vrot.slane %v582, 2
    %v584 = vadd.f32 %v582, %v583
    %v585 = vrot.slane %v584, 1
    %v586 = vadd.f32 %v584, %v585
    %v587 = vadd.f32 %v565, %v567
    %v588 = vrot.slane %v587, 4
    %v589 = vadd.f32 %v587, %v588
    %v590 = vrot.slane %v589, 2
    %v591 = vadd.f32 %v589, %v590
    %v592 = vrot.slane %v591, 1
    %v593 = vadd.f32 %v591, %v592
    %v594 = vadd.f32 %v568, %v570
    %v595 = vrot.slane %v594, 4
    %v596 = vadd.f32 %v594, %v595
    %v597 = vrot.slane %v596, 2
    %v598 = vadd.f32 %v596, %v597
    %v599 = vrot.slane %v598, 1
    %v600 = vadd.f32 %v598, %v599
    %v601 = vadd.f32 %v569, %v571
    %v602 = vrot.slane %v601, 4
    %v603 = vadd.f32 %v601, %v602
    %v604 = vrot.slane %v603, 2
    %v605 = vadd.f32 %v603, %v604
    %v606 = vrot.slane %v605, 1
    %v607 = vadd.f32 %v605, %v606
    %v608 = vadd.f32 %v572, %v574
    %v609 = vrot.slane %v608, 4
    %v610 = vadd.f32 %v608, %v609
    %v611 = vrot.slane %v610, 2
    %v612 = vadd.f32 %v610, %v611
    %v613 = vrot.slane %v612, 1
    %v614 = vadd.f32 %v612, %v613
    %v615 = vadd.f32 %v573, %v575
    %v616 = vrot.slane %v615, 4
    %v617 = vadd.f32 %v615, %v616
    %v618 = vrot.slane %v617, 2
    %v619 = vadd.f32 %v617, %v618
    %v620 = vrot.slane %v619, 1
    %v621 = vadd.f32 %v619, %v620
    %v622 = vadd.f32 %v576, %v578
    %v623 = vrot.slane %v622, 4
    %v624 = vadd.f32 %v622, %v623
    %v625 = vrot.slane %v624, 2
    %v626 = vadd.f32 %v624, %v625
    %v627 = vrot.slane %v626, 1
    %v628 = vadd.f32 %v626, %v627
    %v629 = vadd.f32 %v577, %v579
    %v630 = vrot.slane %v629, 4
    %v631 = vadd.f32 %v629, %v630
    %v632 = vrot.slane %v631, 2
    %v633 = vadd.f32 %v631, %v632
    %v634 = vrot.slane %v633, 1
    %v635 = vadd.f32 %v633, %v634
    %v636 = vmul.f32 %v586, 0.0625
    %v637 = vmul.f32 %v593, 0.0625
    %v638 = vmul.f32 %v600, 0.0625
    %v639 = vmul.f32 %v607, 0.0625
    %v640 = vmul.f32 %v614, 0.0625
    %v641 = vmul.f32 %v621, 0.0625
    %v642 = vmul.f32 %v628, 0.0625
    %v643 = vmul.f32 %v635, 0.0625
    %v644 = vld [vmem:[%s2] sm:$0x1]
    %v645 = vld [vmem:[%s2 + $0x1] sm:$0x1]
    %v646 = vld [vmem:[%s2 + $0x2] sm:$0x1]
    %v647 = vld [vmem:[%s2 + $0x3] sm:$0x1]
    %v648 = vpack.c.bf16 %v644, %v644
    %v649 = vpack.c.bf16 %v645, %v645
    %v650 = vpack.c.bf16 %v646, %v646
    %v651 = vpack.c.bf16 %v647, %v647
    %v656 = vunpack.c.l.b16 %v648
    %v657 = vunpack.c.l.b16 %v649
    %v658 = vunpack.c.l.b16 %v650
    %v659 = vunpack.c.l.b16 %v651
    %v660 = vrot.slane %v657, 7
    %vm661 = vcmask 1041409
    %v662 = vsel %vm661, %v660, %v656
    %v663 = vrot.slane %v658, 6
    %vm664 = vcmask 1042434
    %v665 = vsel %vm664, %v663, %v662
    %v666 = vrot.slane %v659, 5
    %vm667 = vcmask 1043459
    %v668 = vsel %vm667, %v666, %v665
    %v669 = vpack.c.b16 %v668, %v668
    %671 = vmatprep.subr.bf16.mxu0 %v163
    %672 = vmatpush1.bf16.msra.mxu0 %v162
    %673 = vmatprep.subr.bf16.mxu0 %v165
    %674 = vmatpush1.bf16.msra.mxu0 %v164
    %675 = vmatprep.subr.bf16.mxu0 %v167
    %676 = vmatpush1.bf16.msra.mxu0 %v166
    %677 = vmatprep.subr.bf16.mxu0 %v169
    %678 = vmatpush1.bf16.msra.mxu0 %v168
    %679 = vmatprep.subr.bf16.mxu0 %v171
    %680 = vmatpush1.bf16.msra.mxu0 %v170
    %681 = vmatprep.subr.bf16.mxu0 %v173
    %682 = vmatpush1.bf16.msra.mxu0 %v172
    %683 = vmatprep.subr.bf16.mxu0 %v175
    %684 = vmatpush1.bf16.msra.mxu0 %v174
    %685 = vmatprep.subr.bf16.mxu0 %v177
    %686 = vmatpush1.bf16.msra.mxu0 %v176
    %687 = vmatprep.subr.bf16.mxu0 0
    %688 = vmatpush1.bf16.msra.mxu0 0
    %689 = vmatprep.subr.bf16.mxu0 0
    %690 = vmatpush1.bf16.msra.mxu0 0
    %691 = vmatprep.subr.bf16.mxu0 0
    %692 = vmatpush1.bf16.msra.mxu0 0
    %693 = vmatprep.subr.bf16.mxu0 0
    %694 = vmatpush1.bf16.msra.mxu0 0
    %695 = vmatprep.subr.bf16.mxu0 0
    %696 = vmatpush1.bf16.msra.mxu0 0
    %697 = vmatprep.subr.bf16.mxu0 0
    %698 = vmatpush1.bf16.msra.mxu0 0
    %699 = vmatprep.subr.bf16.mxu0 0
    %700 = vmatpush1.bf16.msra.mxu0 0
    %701 = vmatprep.subr.bf16.mxu0 0
    %702 = vmatpush1.bf16.msra.mxu0 0
    %703 = vmatprep.mubr.bf16.mxu0 0
    %704 = vmatmul.mubr.bf16.gmra.mrb[0].mxu0 %v669
    %v705 = vpop.f32.mrb[0].mxu0
    %v706 = vadd.f32 %v428, %v705
    %v707 = vpop.f32.mrb[0].mxu0
    %v708 = vadd.f32 %v432, %v707
    %v709 = vpop.f32.mrb[0].mxu0
    %v710 = vpop.f32.mrb[0].mxu0
    %711 = vdwg.mxu0
    %v712 = vmul.f32 %v706, %v706
    %v713 = vmul.f32 %v708, %v708
    %vm714 = vcmask 1043456
    %v715 = vsel %vm714, %v712, 0.0
    %v716 = vsel %vm714, %v713, 0.0
    %v717 = vadd.f32 %v715, %v716
    %718 = vadd.xlane.f32.xlu0 %v717
    %v719 = vpop.xlane.xlu0 %718
    %v720 = vmax.f32 %v719, 1e-24
    %v721 = vrsqrt.pop %v720
    %v722 = vmul.f32 %v706, %v721
    %v723 = vmul.f32 %v708, %v721
    %v732 = vcombine.low %v404, %v405
    %v734 = vunpack.c.l.s4 1966171168
    %v735 = vunpack.c.0.s8 %v734
    %v736 = vlaneseq
    %v737 = vshrl.u32 %v736, 7
    %v738 = vsub.s32 %v735, %v737
    %v739 = vrot.slane %v732, %v738
    %v741 = vunpack.c.l.s4 1966171168
    %v742 = vunpack.c.0.s8 %v741
    %v743 = vlaneseq
    %v744 = vshrl.u32 %v743, 7
    %v745 = vsub.s32 %v742, %v744
    %v746 = vrot.slane %v739, %v745
    %v747 = vcombine.low %v406, %v407
    %v749 = vunpack.c.l.s4 1966171168
    %v750 = vunpack.c.0.s8 %v749
    %v751 = vlaneseq
    %v752 = vshrl.u32 %v751, 7
    %v753 = vsub.s32 %v750, %v752
    %v754 = vrot.slane %v747, %v753
    %v756 = vunpack.c.l.s4 1966171168
    %v757 = vunpack.c.0.s8 %v756
    %v758 = vlaneseq
    %v759 = vshrl.u32 %v758, 7
    %v760 = vsub.s32 %v757, %v759
    %v761 = vrot.slane %v754, %v760
    %v762 = vcombine.low %v408, %v409
    %v764 = vunpack.c.l.s4 1966171168
    %v765 = vunpack.c.0.s8 %v764
    %v766 = vlaneseq
    %v767 = vshrl.u32 %v766, 7
    %v768 = vsub.s32 %v765, %v767
    %v769 = vrot.slane %v762, %v768
    %v771 = vunpack.c.l.s4 1966171168
    %v772 = vunpack.c.0.s8 %v771
    %v773 = vlaneseq
    %v774 = vshrl.u32 %v773, 7
    %v775 = vsub.s32 %v772, %v774
    %v776 = vrot.slane %v769, %v775
    %v777 = vcombine.low %v410, %v411
    %v779 = vunpack.c.l.s4 1966171168
    %v780 = vunpack.c.0.s8 %v779
    %v781 = vlaneseq
    %v782 = vshrl.u32 %v781, 7
    %v783 = vsub.s32 %v780, %v782
    %v784 = vrot.slane %v777, %v783
    %v786 = vunpack.c.l.s4 1966171168
    %v787 = vunpack.c.0.s8 %v786
    %v788 = vlaneseq
    %v789 = vshrl.u32 %v788, 7
    %v790 = vsub.s32 %v787, %v789
    %v791 = vrot.slane %v784, %v790
    %v796 = vlaneseq
    %vm797 = vcmp.ge.s32.totalorder %v796, 0
    %vm798 = vcmp.lt.s32.totalorder %v796, 256
    %vm799 = vmand %vm797, %vm798
    %800 = vst.msk [vmem:[%s7] ss:$4 sm:$0x3] %vm799, %v746
    %s801 = scalar_lea.vmem %s7, 8
    %802 = vst.msk [vmem:[%s801] ss:$4 sm:$0x3] %vm799, %v761
    %s803 = scalar_lea.vmem %s7, 16
    %804 = vst.msk [vmem:[%s803] ss:$4 sm:$0x3] %vm799, %v776
    %s805 = scalar_lea.vmem %s7, 24
    %806 = vst.msk [vmem:[%s805] ss:$4 sm:$0x3] %vm799, %v791
    %v815 = vcombine.low %v636, %v637
    %v817 = vunpack.c.l.s4 1966171168
    %v818 = vunpack.c.0.s8 %v817
    %v819 = vlaneseq
    %v820 = vshrl.u32 %v819, 7
    %v821 = vsub.s32 %v818, %v820
    %v822 = vrot.slane %v815, %v821
    %v824 = vunpack.c.l.s4 1966171168
    %v825 = vunpack.c.0.s8 %v824
    %v826 = vlaneseq
    %v827 = vshrl.u32 %v826, 7
    %v828 = vsub.s32 %v825, %v827
    %v829 = vrot.slane %v822, %v828
    %v830 = vcombine.low %v638, %v639
    %v832 = vunpack.c.l.s4 1966171168
    %v833 = vunpack.c.0.s8 %v832
    %v834 = vlaneseq
    %v835 = vshrl.u32 %v834, 7
    %v836 = vsub.s32 %v833, %v835
    %v837 = vrot.slane %v830, %v836
    %v839 = vunpack.c.l.s4 1966171168
    %v840 = vunpack.c.0.s8 %v839
    %v841 = vlaneseq
    %v842 = vshrl.u32 %v841, 7
    %v843 = vsub.s32 %v840, %v842
    %v844 = vrot.slane %v837, %v843
    %v845 = vcombine.low %v640, %v641
    %v847 = vunpack.c.l.s4 1966171168
    %v848 = vunpack.c.0.s8 %v847
    %v849 = vlaneseq
    %v850 = vshrl.u32 %v849, 7
    %v851 = vsub.s32 %v848, %v850
    %v852 = vrot.slane %v845, %v851
    %v854 = vunpack.c.l.s4 1966171168
    %v855 = vunpack.c.0.s8 %v854
    %v856 = vlaneseq
    %v857 = vshrl.u32 %v856, 7
    %v858 = vsub.s32 %v855, %v857
    %v859 = vrot.slane %v852, %v858
    %v860 = vcombine.low %v642, %v643
    %v862 = vunpack.c.l.s4 1966171168
    %v863 = vunpack.c.0.s8 %v862
    %v864 = vlaneseq
    %v865 = vshrl.u32 %v864, 7
    %v866 = vsub.s32 %v863, %v865
    %v867 = vrot.slane %v860, %v866
    %v869 = vunpack.c.l.s4 1966171168
    %v870 = vunpack.c.0.s8 %v869
    %v871 = vlaneseq
    %v872 = vshrl.u32 %v871, 7
    %v873 = vsub.s32 %v870, %v872
    %v874 = vrot.slane %v867, %v873
    %s879 = scalar_lea.vmem %s7, 1
    %880 = vst.msk [vmem:[%s879] ss:$4 sm:$0x3] %vm799, %v829
    %s881 = scalar_lea.vmem %s7, 9
    %882 = vst.msk [vmem:[%s881] ss:$4 sm:$0x3] %vm799, %v844
    %s883 = scalar_lea.vmem %s7, 17
    %884 = vst.msk [vmem:[%s883] ss:$4 sm:$0x3] %vm799, %v859
    %s885 = scalar_lea.vmem %s7, 25
    %886 = vst.msk [vmem:[%s885] ss:$4 sm:$0x3] %vm799, %v874
    %v889 = vcombine.low %v722, %v723
    %v891 = vunpack.c.l.s4 1966171168
    %v892 = vunpack.c.0.s8 %v891
    %v893 = vlaneseq
    %v894 = vshrl.u32 %v893, 7
    %v895 = vsub.s32 %v892, %v894
    %v896 = vrot.slane %v889, %v895
    %v897 = vcombine.high %v896, %v896
    %v899 = vunpack.c.l.s4 1966171168
    %v900 = vunpack.c.0.s8 %v899
    %v901 = vlaneseq
    %v902 = vshrl.u32 %v901, 7
    %v903 = vsub.s32 %v900, %v902
    %v904 = vrot.slane %v896, %v903
    %v906 = vunpack.c.l.s4 1966171168
    %v907 = vunpack.c.0.s8 %v906
    %v908 = vlaneseq
    %v909 = vshrl.u32 %v908, 7
    %v910 = vsub.s32 %v907, %v909
    %v911 = vrot.slane %v897, %v910
    %v912 = vcombine.high %v904, %v904
    %v913 = vcombine.high %v911, %v911
    %s918 = scalar_lea.vmem %s7, 2
    %919 = vst.msk [vmem:[%s918] ss:$4 sm:$0x3] %vm799, %v904
    %s920 = scalar_lea.vmem %s7, 10
    %921 = vst.msk [vmem:[%s920] ss:$4 sm:$0x3] %vm799, %v911
    %s922 = scalar_lea.vmem %s7, 18
    %923 = vst.msk [vmem:[%s922] ss:$4 sm:$0x3] %vm799, %v912
    %s924 = scalar_lea.vmem %s7, 26
    %925 = vst.msk [vmem:[%s924] ss:$4 sm:$0x3] %vm799, %v913
    // Predicated region
    $region46: #{tpu_custom_call.1} parent=1 // pred_check
      _
    $region47: #{tpu_custom_call.1} parent=1 // pred_check_branch
      %927 = sbr.rel (0) target = $region49
    $region48: #{tpu_custom_call.1} parent=1 // pred_region
      _
    $region49: #{tpu_custom_call.1} parent=1 // pred_fallthru
      _
    // Predicated region
    $region50: #{tpu_custom_call.1} parent=1 // pred_check
      _
    $region51: #{tpu_custom_call.1} parent=1 // pred_check_branch
      %929 = sbr.rel (0) target = $region53
    $region52: #{tpu_custom_call.1} parent=1 // pred_region
      _
    $region53: #{tpu_custom_call.1} parent=1 // pred_fallthru
      _
    %930 = vsyncpa [#allocation3], 1
    %931 = vsyncpa [#allocation5], 1
    %932 = vsyncpa [#allocation8], 1

</llo_original>
